<compile_context>
chip_gen: v5e
topology: v5e:2x2
jax: 0.10.0
libtpu: 0.0.40
codegen_flags: <defaults>
</compile_context>

<pallas_src>
import jax
import jax.numpy as jnp
from jax import lax
from jax.experimental import pallas as pl
from jax.experimental.pallas import tpu as pltpu


def _round_up(n, m):
    return ((n + m - 1) // m) * m


def _anfis_kernel(x_ref, wq_ref, wm_ref, wc_ref, cm_ref, cb_ref, o_ref):
    # x:  (TB, n_in)  -- streamed batch tile (native dtype)
    # wq: (R, n_in)   -- quadratic membership coeffs (multiply x*x), f32, resident
    # wm: (R, n_in)   -- linear membership coeffs (multiply x),      f32, resident
    # wc: (R, n_in)   -- Takagi-Sugeno consequent weight,            f32, resident
    # cm: (R, 1)      -- membership constant column
    # cb: (R, 1)      -- consequent bias column
    # o:  (1, TB)     -- lane-dense output row
    x = x_ref[...].astype(jnp.float32)          # (TB, n_in)
    xx = x * x

    dn = (((1,), (1,)), ((), ()))               # contract the n_in axis of both

    # log firing strengths, rules on sublanes / batch on lanes: (R, TB)
    log_firing = (
        lax.dot_general(wq_ref[...], xx, dn, preferred_element_type=jnp.float32)
        + lax.dot_general(wm_ref[...], x, dn, preferred_element_type=jnp.float32)
        + cm_ref[...])
    # Takagi-Sugeno consequent in the same layout: (R, TB)
    cq = (lax.dot_general(wc_ref[...], x, dn, preferred_element_type=jnp.float32)
          + cb_ref[...])

    # firing = prod_i exp(-0.5 z_i^2) == exp(sum_i -0.5 z_i^2), clamp(min=1e-8)
    firing = jnp.maximum(jnp.exp(log_firing), 1e-8)          # (R, TB)

    denom = jnp.sum(firing, axis=0, keepdims=True) + 1e-8    # (1, TB) sublane fold
    num = jnp.sum(firing * cq, axis=0, keepdims=True)        # (1, TB)
    o_ref[...] = num * pl.reciprocal(denom)                  # exact reciprocal


def anfis_forward(x, mu, sigma, weight, bias, *, block_batch=2048):
    """x: (B, n_inputs); mu, sigma: (n_inputs, n_rules);
    weight: (n_rules, n_inputs); bias: (n_rules,). Returns (B, 1) f32."""
    B, n_in = x.shape
    R = mu.shape[1]
    f32 = jnp.float32

    # --- fold membership (quadratic expansion) + consequent into MXU weights ---
    sig = jnp.maximum(sigma.astype(f32), 1e-8)               # clamp(min=1e-8)
    inv_s2 = 1.0 / (sig * sig)                               # (n_in, R)
    wq = (-0.5 * inv_s2).T                                   # (R, n_in), * x^2
    wm = (mu.astype(f32) * inv_s2).T                         # (R, n_in), * x
    cm = jnp.sum(-0.5 * jnp.square(mu.astype(f32)) * inv_s2,
                 axis=0).reshape(R, 1)                       # (R, 1)
    wc = weight.astype(f32)                                  # (R, n_in)
    cb = bias.astype(f32).reshape(R, 1)                      # (R, 1)

    # --- batch tiling: lane-dense tiles (multiple of 128), >=2 tiles when
    #     the batch allows it (keeps both v7x TensorCores busy) ---
    tb = _round_up(min(block_batch, max(B, 1)), 128)
    if B > 128 and _round_up(B, tb) // tb < 2:
        tb = _round_up(-(-B // 2), 128)
    b_pad = _round_up(B, tb)
    if b_pad != B:
        x = jnp.pad(x, ((0, b_pad - B), (0, 0)))
    n_tiles = b_pad // tb

    cost = pl.CostEstimate(
        flops=6 * b_pad * n_in * R + 6 * b_pad * R,
        transcendentals=b_pad * R,
        bytes_accessed=int(b_pad * n_in * x.dtype.itemsize + 4 * b_pad
                           + 4 * (wq.size + wm.size + wc.size + cm.size + cb.size)),
    )

    out = pl.pallas_call(
        _anfis_kernel,
        out_shape=jax.ShapeDtypeStruct((n_tiles, 1, tb), f32),
        grid=(n_tiles,),
        in_specs=[
            pl.BlockSpec((tb, n_in), lambda i: (i, 0)),      # streamed x tile
            pl.BlockSpec((R, n_in), lambda i: (0, 0)),       # resident params
            pl.BlockSpec((R, n_in), lambda i: (0, 0)),
            pl.BlockSpec((R, n_in), lambda i: (0, 0)),
            pl.BlockSpec((R, 1), lambda i: (0, 0)),
            pl.BlockSpec((R, 1), lambda i: (0, 0)),
        ],
        out_specs=pl.BlockSpec((None, 1, tb), lambda i: (i, 0, 0)),  # (1, TB) row
        compiler_params=pltpu.CompilerParams(
            dimension_semantics=("parallel",),
            vmem_limit_bytes=32 * 1024 * 1024,
        ),
        cost_estimate=cost,
    )(x, wq, wm, wc, cm, cb)

    # Row-major flatten of (n_tiles, 1, tb) already matches batch order.
    return out.reshape(b_pad, 1)[:B]


def anfis_reference(x, mu, sigma, weight, bias):
    """Pure-JAX reference mirroring the PyTorch forward exactly."""
    sig = jnp.maximum(sigma[None, :, :], 1e-8)
    x_exp = x[:, :, None]
    membership = jnp.exp(-0.5 * ((x_exp - mu[None, :, :]) / sig) ** 2)
    firing = jnp.prod(membership, axis=1)
    firing = jnp.maximum(firing, 1e-8)
    norm_firing = firing / (jnp.sum(firing, axis=1, keepdims=True) + 1e-8)
    cq = x @ weight.T + bias[None, :]
    return jnp.sum(norm_firing * cq, axis=1, keepdims=True)


if __name__ == "__main__":
    # Deterministic synthetic parameters (module __init__ shapes):
    #   mu, sigma: (n_inputs, n_rules); consequent: Linear(n_inputs, n_rules).
    n_inputs, n_rules = 4, 16
    key = jax.random.PRNGKey(0)
    k_mu, k_sig, k_w, k_b, k_x = jax.random.split(key, 5)

    mu = 0.5 * jax.random.normal(k_mu, (n_inputs, n_rules), dtype=jnp.float32)
    sigma = jnp.exp(jax.random.normal(k_sig, (n_inputs, n_rules), dtype=jnp.float32))
    # xavier_normal_ for Linear(n_inputs -> n_rules): std = sqrt(2/(fan_in+fan_out))
    xavier_std = (2.0 / (n_inputs + n_rules)) ** 0.5
    weight = xavier_std * jax.random.normal(k_w, (n_rules, n_inputs), dtype=jnp.float32)
    bound = 1.0 / (n_inputs ** 0.5)
    bias = jax.random.uniform(k_b, (n_rules,), minval=-bound, maxval=bound,
                              dtype=jnp.float32)

    # Small single-tile batch + a ragged batch that exercises padding and a
    # 2-tile grid (megacore path).
    for batch, bb in ((8, 2048), (300, 256)):
        kx = jax.random.fold_in(k_x, batch)
        x = jax.random.normal(kx, (batch, n_inputs), dtype=jnp.float32)

        out = jax.block_until_ready(
            anfis_forward(x, mu, sigma, weight, bias, block_batch=bb))
        ref = anfis_reference(x, mu, sigma, weight, bias)

        assert out.shape == (batch, 1), out.shape
        assert jnp.allclose(out, ref, atol=1e-4, rtol=1e-4), (out, ref)

    print("KERNEL_OK")
</pallas_src>

<mosaic_0001>
module attributes {stable_mosaic.version = 11 : i64} {
  func.func @_anfis_kernel(%arg0: i32, %arg1: memref<128x4xf32, #tpu.memory_space<vmem>>, %arg2: memref<16x4xf32, #tpu.memory_space<vmem>>, %arg3: memref<16x4xf32, #tpu.memory_space<vmem>>, %arg4: memref<16x4xf32, #tpu.memory_space<vmem>>, %arg5: memref<16x1xf32, #tpu.memory_space<vmem>>, %arg6: memref<16x1xf32, #tpu.memory_space<vmem>>, %arg7: memref<1x1x128xf32, #tpu.memory_space<vmem>>) attributes {dimension_semantics = [#tpu.dimension_semantics<parallel>], iteration_bounds = array<i64: 1>, scalar_prefetch = 0 : i64, scratch_operands = 0 : i64, tpu.core_type = #tpu.core_type<tc>, window_params = [{transform_indices = @transform_0, window_bounds = array<i64: 128, 4>}, {pipeline_mode = #tpu.pipeline_mode<synchronous>, transform_indices = @transform_1, window_bounds = array<i64: 16, 4>}, {pipeline_mode = #tpu.pipeline_mode<synchronous>, transform_indices = @transform_2, window_bounds = array<i64: 16, 4>}, {pipeline_mode = #tpu.pipeline_mode<synchronous>, transform_indices = @transform_3, window_bounds = array<i64: 16, 4>}, {pipeline_mode = #tpu.pipeline_mode<synchronous>, transform_indices = @transform_4, window_bounds = array<i64: 16, 1>}, {pipeline_mode = #tpu.pipeline_mode<synchronous>, transform_indices = @transform_5, window_bounds = array<i64: 16, 1>}, {transform_indices = @transform_6, window_bounds = array<i64: 1, 1, 128>}]} {
    %c0 = arith.constant 0 : index
    %c0_0 = arith.constant 0 : index
    %0 = vector.load %arg1[%c0, %c0_0] : memref<128x4xf32, #tpu.memory_space<vmem>>, vector<128x4xf32>
    %1 = arith.mulf %0, %0 : vector<128x4xf32>
    %c0_1 = arith.constant 0 : index
    %c0_2 = arith.constant 0 : index
    %2 = vector.load %arg2[%c0_1, %c0_2] : memref<16x4xf32, #tpu.memory_space<vmem>>, vector<16x4xf32>
    %cst = arith.constant dense<0.000000e+00> : vector<16x128xf32>
    %3 = tpu.matmul %2, %1, %cst {dimension_numbers = #tpu.dot_dimension_numbers<[1], [1], [0], [0], [0, 0, 1, 0], [], []>} : vector<16x4xf32>, vector<128x4xf32>, vector<16x128xf32> -> vector<16x128xf32>
    %c0_3 = arith.constant 0 : index
    %c0_4 = arith.constant 0 : index
    %4 = vector.load %arg3[%c0_3, %c0_4] : memref<16x4xf32, #tpu.memory_space<vmem>>, vector<16x4xf32>
    %cst_5 = arith.constant dense<0.000000e+00> : vector<16x128xf32>
    %5 = tpu.matmul %4, %0, %cst_5 {dimension_numbers = #tpu.dot_dimension_numbers<[1], [1], [0], [0], [0, 0, 1, 0], [], []>} : vector<16x4xf32>, vector<128x4xf32>, vector<16x128xf32> -> vector<16x128xf32>
    %6 = arith.addf %3, %5 : vector<16x128xf32>
    %c0_6 = arith.constant 0 : index
    %c0_7 = arith.constant 0 : index
    %7 = vector.load %arg5[%c0_6, %c0_7] : memref<16x1xf32, #tpu.memory_space<vmem>>, vector<16x1xf32>
    %8 = vector.broadcast %7 : vector<16x1xf32> to vector<16x128xf32>
    %9 = arith.addf %6, %8 : vector<16x128xf32>
    %c0_8 = arith.constant 0 : index
    %c0_9 = arith.constant 0 : index
    %10 = vector.load %arg4[%c0_8, %c0_9] : memref<16x4xf32, #tpu.memory_space<vmem>>, vector<16x4xf32>
    %cst_10 = arith.constant dense<0.000000e+00> : vector<16x128xf32>
    %11 = tpu.matmul %10, %0, %cst_10 {dimension_numbers = #tpu.dot_dimension_numbers<[1], [1], [0], [0], [0, 0, 1, 0], [], []>} : vector<16x4xf32>, vector<128x4xf32>, vector<16x128xf32> -> vector<16x128xf32>
    %c0_11 = arith.constant 0 : index
    %c0_12 = arith.constant 0 : index
    %12 = vector.load %arg6[%c0_11, %c0_12] : memref<16x1xf32, #tpu.memory_space<vmem>>, vector<16x1xf32>
    %13 = vector.broadcast %12 : vector<16x1xf32> to vector<16x128xf32>
    %14 = arith.addf %11, %13 : vector<16x128xf32>
    %15 = math.exp %9 : vector<16x128xf32>
    %cst_13 = arith.constant 9.99999993E-9 : f32
    %16 = vector.broadcast %cst_13 : f32 to vector<16x128xf32>
    %17 = arith.maximumf %15, %16 : vector<16x128xf32>
    %cst_14 = arith.constant dense<0.000000e+00> : vector<128xf32>
    %18 = vector.multi_reduction <add>, %17, %cst_14 [0] : vector<16x128xf32> to vector<128xf32>
    %19 = vector.shape_cast %18 : vector<128xf32> to vector<1x128xf32>
    %cst_15 = arith.constant 9.99999993E-9 : f32
    %20 = vector.broadcast %cst_15 : f32 to vector<1x128xf32>
    %21 = arith.addf %19, %20 : vector<1x128xf32>
    %22 = arith.mulf %17, %14 : vector<16x128xf32>
    %cst_16 = arith.constant dense<0.000000e+00> : vector<128xf32>
    %23 = vector.multi_reduction <add>, %22, %cst_16 [0] : vector<16x128xf32> to vector<128xf32>
    %24 = vector.shape_cast %23 : vector<128xf32> to vector<1x128xf32>
    %25 = tpu.reciprocal %21 : vector<1x128xf32> -> vector<1x128xf32>
    %26 = arith.mulf %24, %25 : vector<1x128xf32>
    %c0_17 = arith.constant 0 : index
    %c0_18 = arith.constant 0 : index
    %c0_19 = arith.constant 0 : index
    %27 = vector.load %arg7[%c0_17, %c0_18, %c0_19] : memref<1x1x128xf32, #tpu.memory_space<vmem>>, vector<1x1x128xf32>
    %28 = vector.shape_cast %27 : vector<1x1x128xf32> to vector<1x128xf32>
    %29 = vector.shape_cast %26 : vector<1x128xf32> to vector<1x1x128xf32>
    tpu.vector_store %arg7[%c0_17, %c0_18, %c0_19], %29 {strides = array<i32>} : memref<1x1x128xf32, #tpu.memory_space<vmem>>, vector<1x1x128xf32>,
    return
  }
  func.func @transform_0(%arg0: i32) -> (i32, i32) {
    %c0_i32 = arith.constant 0 : i32
    %c0_i32_0 = arith.constant 0 : i32
    return %arg0, %c0_i32 : i32, i32
  }
  func.func @transform_1(%arg0: i32) -> (i32, i32) {
    %c0_i32 = arith.constant 0 : i32
    %c0_i32_0 = arith.constant 0 : i32
    %c0_i32_1 = arith.constant 0 : i32
    return %c0_i32, %c0_i32_0 : i32, i32
  }
  func.func @transform_2(%arg0: i32) -> (i32, i32) {
    %c0_i32 = arith.constant 0 : i32
    %c0_i32_0 = arith.constant 0 : i32
    %c0_i32_1 = arith.constant 0 : i32
    return %c0_i32, %c0_i32_0 : i32, i32
  }
  func.func @transform_3(%arg0: i32) -> (i32, i32) {
    %c0_i32 = arith.constant 0 : i32
    %c0_i32_0 = arith.constant 0 : i32
    %c0_i32_1 = arith.constant 0 : i32
    return %c0_i32, %c0_i32_0 : i32, i32
  }
  func.func @transform_4(%arg0: i32) -> (i32, i32) {
    %c0_i32 = arith.constant 0 : i32
    %c0_i32_0 = arith.constant 0 : i32
    %c0_i32_1 = arith.constant 0 : i32
    return %c0_i32, %c0_i32_0 : i32, i32
  }
  func.func @transform_5(%arg0: i32) -> (i32, i32) {
    %c0_i32 = arith.constant 0 : i32
    %c0_i32_0 = arith.constant 0 : i32
    %c0_i32_1 = arith.constant 0 : i32
    return %c0_i32, %c0_i32_0 : i32, i32
  }
  func.func @transform_6(%arg0: i32) -> (i32, i32, i32) {
    %c0_i32 = arith.constant 0 : i32
    %c0_i32_0 = arith.constant 0 : i32
    %c0_i32_1 = arith.constant 0 : i32
    return %arg0, %c0_i32, %c0_i32_0 : i32, i32, i32
  }
}

</mosaic_0001>

<llo_original>
// kernel: tpu_custom_call.1
$region0: #{tpu_custom_call.1}
  #allocation0 [shape = 'u32[]', space=smem, size = 0x4, offset = 0x4, fixed_abs, tag = 'smem constant byte address 0x4 - core index']
  #allocation1 [shape = 'u32[72,128]{1,0:T(1,128)}', space=vmem, size = 0x9000, scoped, tag = 'internal scratch']
  %s0 = inlined_call_operand.vmem [shape: f32[128,4], index: 0, kind: input, shape index: {}]
  %s1 = inlined_call_operand.vmem [shape: f32[16,4], index: 1, kind: input, shape index: {}]
  %s2 = inlined_call_operand.vmem [shape: f32[16,4], index: 2, kind: input, shape index: {}]
  %s3 = inlined_call_operand.vmem [shape: f32[16,4], index: 3, kind: input, shape index: {}]
  %s4 = inlined_call_operand.vmem [shape: f32[16,1], index: 4, kind: input, shape index: {}]
  %s5 = inlined_call_operand.vmem [shape: f32[16,1], index: 5, kind: input, shape index: {}]
  %s6 = inlined_call_operand.hbm [shape: f32[1,1,128], index: 6, kind: output, shape index: {}]
  %s7 = sld [smem:[#allocation0]]
  $region34: #{tpu_custom_call.1} parent=0
    _
  %s9 = ssub.s32 1, %s7
  %s10 = scalar_select 0, %s9, %s7
  $region1: #{tpu_custom_call.1} parent=0
    #allocation2 [shape = 'u8[512]{0}', space=vmem, size = 0x400, scoped, tag = 'output window, operand 0, single buffered']
    #allocation3 [shape = 's32[1]{0}', space=sflag, size = 0x4, scoped, tag = 'scoped memory for tpu_custom_call.1']
    %11 = vsyncpa [#allocation3], 0
    // Predicated region
    $region2: #{tpu_custom_call.1} parent=1 // pred_check
      _
    $region3: #{tpu_custom_call.1} parent=1 // pred_check_branch
      %13 = sbr.rel (0) target = $region5
    $region4: #{tpu_custom_call.1} parent=1 // pred_region
      _
    $region5: #{tpu_custom_call.1} parent=1 // pred_fallthru
      _
    // Predicated region
    $region6: #{tpu_custom_call.1} parent=1 // pred_check
      _
    $region7: #{tpu_custom_call.1} parent=1 // pred_check_branch
      %15 = sbr.rel (0) target = $region9
    $region8: #{tpu_custom_call.1} parent=1 // pred_region
      _
    $region9: #{tpu_custom_call.1} parent=1 // pred_fallthru
      _
    // Predicated region
    $region10: #{tpu_custom_call.1} parent=1 // pred_check
      _
    $region11: #{tpu_custom_call.1} parent=1 // pred_check_branch
      %17 = sbr.rel (0) target = $region13
    $region12: #{tpu_custom_call.1} parent=1 // pred_region
      _
    $region13: #{tpu_custom_call.1} parent=1 // pred_fallthru
      _
    // Predicated region
    $region14: #{tpu_custom_call.1} parent=1 // pred_check
      _
    $region15: #{tpu_custom_call.1} parent=1 // pred_check_branch
      %19 = sbr.rel (0) target = $region17
    $region16: #{tpu_custom_call.1} parent=1 // pred_region
      _
    $region17: #{tpu_custom_call.1} parent=1 // pred_fallthru
      _
    // Predicated region
    $region18: #{tpu_custom_call.1} parent=1 // pred_check
      _
    $region19: #{tpu_custom_call.1} parent=1 // pred_check_branch
      %21 = sbr.rel (0) target = $region21
    $region20: #{tpu_custom_call.1} parent=1 // pred_region
      _
    $region21: #{tpu_custom_call.1} parent=1 // pred_fallthru
      _
    // Predicated region
    $region22: #{tpu_custom_call.1} parent=1 // pred_check
      _
    $region23: #{tpu_custom_call.1} parent=1 // pred_check_branch
      %23 = sbr.rel (0) target = $region25
    $region24: #{tpu_custom_call.1} parent=1 // pred_region
      _
    $region25: #{tpu_custom_call.1} parent=1 // pred_fallthru
      _
    %v24 = vld [vmem:[%s0] sm:$0xff]
    %v25 = vld [vmem:[%s0 + $0x8] sm:$0xff]
    %v26 = vld [vmem:[%s0 + $0x10] sm:$0xff]
    %v27 = vld [vmem:[%s0 + $0x18] sm:$0xff]
    %v28 = vld [vmem:[%s0 + $0x20] sm:$0xff]
    %v29 = vld [vmem:[%s0 + $0x28] sm:$0xff]
    %v30 = vld [vmem:[%s0 + $0x30] sm:$0xff]
    %v31 = vld [vmem:[%s0 + $0x38] sm:$0xff]
    %v32 = vld [vmem:[%s0 + $0x40] sm:$0xff]
    %v33 = vld [vmem:[%s0 + $0x48] sm:$0xff]
    %v34 = vld [vmem:[%s0 + $0x50] sm:$0xff]
    %v35 = vld [vmem:[%s0 + $0x58] sm:$0xff]
    %v36 = vld [vmem:[%s0 + $0x60] sm:$0xff]
    %v37 = vld [vmem:[%s0 + $0x68] sm:$0xff]
    %v38 = vld [vmem:[%s0 + $0x70] sm:$0xff]
    %v39 = vld [vmem:[%s0 + $0x78] sm:$0xff]
    %v40 = vmul.f32 %v24, %v24
    %v41 = vmul.f32 %v25, %v25
    %v42 = vmul.f32 %v26, %v26
    %v43 = vmul.f32 %v27, %v27
    %v44 = vmul.f32 %v28, %v28
    %v45 = vmul.f32 %v29, %v29
    %v46 = vmul.f32 %v30, %v30
    %v47 = vmul.f32 %v31, %v31
    %v48 = vmul.f32 %v32, %v32
    %v49 = vmul.f32 %v33, %v33
    %v50 = vmul.f32 %v34, %v34
    %v51 = vmul.f32 %v35, %v35
    %v52 = vmul.f32 %v36, %v36
    %v53 = vmul.f32 %v37, %v37
    %v54 = vmul.f32 %v38, %v38
    %v55 = vmul.f32 %v39, %v39
    %v56 = vld [vmem:[%s1] sm:$0xff]
    %v57 = vld [vmem:[%s1 + $0x8] sm:$0xff]
    %v58 = vld [vmem:[%s2] sm:$0xff]
    %v59 = vld [vmem:[%s2 + $0x8] sm:$0xff]
    %vm60 = vcmask 31744
    %v62 = vsel %vm60, %v58, 0
    %v65 = vsel %vm60, %v59, 0
    %v68 = vsel %vm60, %v24, 0
    %v71 = vsel %vm60, %v25, 0
    %v74 = vsel %vm60, %v26, 0
    %v77 = vsel %vm60, %v27, 0
    %v80 = vsel %vm60, %v28, 0
    %v83 = vsel %vm60, %v29, 0
    %v86 = vsel %vm60, %v30, 0
    %v89 = vsel %vm60, %v31, 0
    %v92 = vsel %vm60, %v32, 0
    %v95 = vsel %vm60, %v33, 0
    %v98 = vsel %vm60, %v34, 0
    %v101 = vsel %vm60, %v35, 0
    %v104 = vsel %vm60, %v36, 0
    %v107 = vsel %vm60, %v37, 0
    %v110 = vsel %vm60, %v38, 0
    %v113 = vsel %vm60, %v39, 0
    %115 = vmatpush.xpose.msra.mxu0 %v113
    %116 = vmatpush.xpose.msra.mxu0 %v110
    %117 = vmatpush.xpose.msra.mxu0 %v107
    %118 = vmatpush.xpose.msra.mxu0 %v104
    %119 = vmatpush.xpose.msra.mxu0 %v101
    %120 = vmatpush.xpose.msra.mxu0 %v98
    %121 = vmatpush.xpose.msra.mxu0 %v95
    %122 = vmatpush.xpose.msra.mxu0 %v92
    %123 = vmatpush.xpose.msra.mxu0 %v89
    %124 = vmatpush.xpose.msra.mxu0 %v86
    %125 = vmatpush.xpose.msra.mxu0 %v83
    %126 = vmatpush.xpose.msra.mxu0 %v80
    %127 = vmatpush.xpose.msra.mxu0 %v77
    %128 = vmatpush.xpose.msra.mxu0 %v74
    %129 = vmatpush.xpose.msra.mxu0 %v71
    %130 = vmatpush.xpose.msra.mxu0 %v68
    %131 = vmatmul.f32.gmra.mxu0 %v62
    %v132 = vpop.f32.mrf.mxu0
    %v133 = vadd.f32 0.0, %v132
    %134 = vmatmul.f32.gmra.mxu0 %v65
    %v135 = vpop.f32.mrf.mxu0
    %v136 = vadd.f32 0.0, %v135
    %137 = vdwg.mxu0
    %v139 = vsel %vm60, %v56, 0
    %v142 = vsel %vm60, %v57, 0
    %v145 = vsel %vm60, %v40, 0
    %v148 = vsel %vm60, %v41, 0
    %v151 = vsel %vm60, %v42, 0
    %v154 = vsel %vm60, %v43, 0
    %v157 = vsel %vm60, %v44, 0
    %v160 = vsel %vm60, %v45, 0
    %v163 = vsel %vm60, %v46, 0
    %v166 = vsel %vm60, %v47, 0
    %v169 = vsel %vm60, %v48, 0
    %v172 = vsel %vm60, %v49, 0
    %v175 = vsel %vm60, %v50, 0
    %v178 = vsel %vm60, %v51, 0
    %v181 = vsel %vm60, %v52, 0
    %v184 = vsel %vm60, %v53, 0
    %v187 = vsel %vm60, %v54, 0
    %v190 = vsel %vm60, %v55, 0
    %192 = vmatpush.xpose.msra.mxu0 %v190
    %193 = vmatpush.xpose.msra.mxu0 %v187
    %194 = vmatpush.xpose.msra.mxu0 %v184
    %195 = vmatpush.xpose.msra.mxu0 %v181
    %196 = vmatpush.xpose.msra.mxu0 %v178
    %197 = vmatpush.xpose.msra.mxu0 %v175
    %198 = vmatpush.xpose.msra.mxu0 %v172
    %199 = vmatpush.xpose.msra.mxu0 %v169
    %200 = vmatpush.xpose.msra.mxu0 %v166
    %201 = vmatpush.xpose.msra.mxu0 %v163
    %202 = vmatpush.xpose.msra.mxu0 %v160
    %203 = vmatpush.xpose.msra.mxu0 %v157
    %204 = vmatpush.xpose.msra.mxu0 %v154
    %205 = vmatpush.xpose.msra.mxu0 %v151
    %206 = vmatpush.xpose.msra.mxu0 %v148
    %207 = vmatpush.xpose.msra.mxu0 %v145
    %208 = vmatmul.f32.gmra.mxu0 %v139
    %v209 = vpop.f32.mrf.mxu0
    %v210 = vadd.f32 %v133, %v209
    %211 = vmatmul.f32.gmra.mxu0 %v142
    %v212 = vpop.f32.mrf.mxu0
    %v213 = vadd.f32 %v136, %v212
    %214 = vdwg.mxu0
    %v215 = vld [vmem:[%s4] sm:$0xff]
    %v216 = vld [vmem:[%s4 + $0x8] sm:$0xff]
    %218 = vset.pattern.permute.xlu0 0
    %219 = vperm.xlu0 %218, %v215
    %v220 = vpop.permute.xlu0 %219
    %223 = vset.pattern.permute.xlu0 0
    %224 = vperm.xlu0 %223, %v216
    %v225 = vpop.permute.xlu0 %224
    %v227 = vadd.f32 %v210, %v220
    %v228 = vadd.f32 %v213, %v225
    %v229 = vld [vmem:[%s3] sm:$0xff]
    %v230 = vld [vmem:[%s3 + $0x8] sm:$0xff]
    %v231 = vld [vmem:[%s5] sm:$0xff]
    %v232 = vld [vmem:[%s5 + $0x8] sm:$0xff]
    %234 = vset.pattern.permute.xlu0 0
    %235 = vperm.xlu0 %234, %v231
    %v236 = vpop.permute.xlu0 %235
    %239 = vset.pattern.permute.xlu0 0
    %240 = vperm.xlu0 %239, %v232
    %v241 = vpop.permute.xlu0 %240
    %v244 = vsel %vm60, %v229, 0
    %v247 = vsel %vm60, %v230, 0
    %249 = vmatpush.xpose.msra.mxu0 %v113
    %250 = vmatpush.xpose.msra.mxu0 %v110
    %251 = vmatpush.xpose.msra.mxu0 %v107
    %252 = vmatpush.xpose.msra.mxu0 %v104
    %253 = vmatpush.xpose.msra.mxu0 %v101
    %254 = vmatpush.xpose.msra.mxu0 %v98
    %255 = vmatpush.xpose.msra.mxu0 %v95
    %256 = vmatpush.xpose.msra.mxu0 %v92
    %257 = vmatpush.xpose.msra.mxu0 %v89
    %258 = vmatpush.xpose.msra.mxu0 %v86
    %259 = vmatpush.xpose.msra.mxu0 %v83
    %260 = vmatpush.xpose.msra.mxu0 %v80
    %261 = vmatpush.xpose.msra.mxu0 %v77
    %262 = vmatpush.xpose.msra.mxu0 %v74
    %263 = vmatpush.xpose.msra.mxu0 %v71
    %264 = vmatpush.xpose.msra.mxu0 %v68
    %265 = vmatmul.f32.gmra.mxu0 %v244
    %v266 = vpop.f32.mrf.mxu0
    %v267 = vadd.f32 %v236, %v266
    %268 = vmatmul.f32.gmra.mxu0 %v247
    %v269 = vpop.f32.mrf.mxu0
    %v270 = vadd.f32 %v241, %v269
    %271 = vdwg.mxu0
    %v272 = vmul.f32 %v227, 1.442695
    %v273 = vpow.pop %v272
    %v274 = vmul.f32 %v228, 1.442695
    %v275 = vpow.pop %v274
    %v276 = vmax.f32 %v273, 1e-08
    %v277 = vmax.f32 %v275, 1e-08
    %v278 = vadd.f32 %v276, %v277
    %v279 = vrot.slane %v278, 4
    %v280 = vadd.f32 %v278, %v279
    %v281 = vrot.slane %v280, 2
    %v282 = vadd.f32 %v280, %v281
    %v283 = vrot.slane %v282, 1
    %v284 = vadd.f32 %v282, %v283
    %v285 = vadd.f32 %v284, 1e-08
    %v286 = vmul.f32 %v276, %v267
    %v287 = vmul.f32 %v277, %v270
    %v288 = vadd.f32 %v286, %v287
    %v289 = vrot.slane %v288, 4
    %v290 = vadd.f32 %v288, %v289
    %v291 = vrot.slane %v290, 2
    %v292 = vadd.f32 %v290, %v291
    %v293 = vrot.slane %v292, 1
    %v294 = vadd.f32 %v292, %v293
    %v295 = vrcp.pop %v285
    %v296 = vmul.f32 %v285, %v295
    %v297 = vsub.f32 1.0, %v296
    %v298 = vmul.f32 %v295, %v297
    %v299 = vadd.f32 %v295, %v298
    %vm300 = vweird.f32 %v285
    %vm301 = vweird.f32 %v295
    %vm302 = vmor %vm300, %vm301
    %v303 = vsel %vm302, %v295, %v299
    %v304 = vand.u32 2147483647, %v285
    %vm305 = vcmp.eq.f32.partialorder %v304, 8.507059e+37
    %v306 = vand.u32 %v285, 2147483648
    %v307 = vor.u32 1.1754944e-38, %v306
    %v308 = vsel %vm305, %v307, %v303
    %v309 = vmul.f32 %v294, %v308
    %310 = vst [vmem:[#allocation2] sm:$0x1] %v309
    // Predicated region
    $region26: #{tpu_custom_call.1} parent=1 // pred_check
      _
    $region27: #{tpu_custom_call.1} parent=1 // pred_check_branch
      %312 = sbr.rel (0) target = $region29
    $region28: #{tpu_custom_call.1} parent=1 // pred_region
      %314 = vsyncadd [#allocation3], 0
      %s316 = sshll.u32 [#allocation2], 4
      %s317 = int_to_ptr.vmem [resolvable:$true] %s316
      %s318 = sshll.u32 %s6, 4
      %s319 = int_to_ptr.hbm [resolvable:$true] %s318
      %321 = dma.vmem_to_hbm [thread:$0]  %s317, 16, %s319, [#allocation3]
    $region29: #{tpu_custom_call.1} parent=1 // pred_fallthru
      _
    // Predicated region
    $region30: #{tpu_custom_call.1} parent=1 // pred_check
      _
    $region31: #{tpu_custom_call.1} parent=1 // pred_check_branch
      %323 = sbr.rel (0) target = $region33
    $region32: #{tpu_custom_call.1} parent=1 // pred_region
      %325 = dma.done [#allocation3], 16
    $region33: #{tpu_custom_call.1} parent=1 // pred_fallthru
      _
    %326 = vsyncpa [#allocation3], 1

</llo_original>
